<compile_context>
chip_gen: v7x
topology: tpu7x:2x2x1
jax: 0.10.0
libtpu: 0.0.40
codegen_flags: <defaults>
</compile_context>

<pallas_src>
import functools

import numpy as np
import jax
import jax.numpy as jnp
from jax.experimental import pallas as pl
from jax.experimental.pallas import tpu as pltpu

L = 96              # forced by nn.LayerNorm([96]); also the `channel` ctor arg
HIDDEN = 2 * L      # true fc hidden width (192)
HIDDEN_PAD = 256    # zero-padded hidden width: dense 128-lane MXU tiles
EPS = 1e-6
_MAX_TM = 1024      # row-tile cap (multiple of 8); ~0.4 MiB per f32 row buffer


def _round_up(n, m):
    return (n + m - 1) // m * m


@functools.lru_cache(maxsize=None)
def _dct_matrix_T_np(n):
    """Returns D^T with D[k, m] = 2*cos(pi*(2m+1)*k/(2n)) so that
    dct(x) == x @ D^T  (DCT-II, norm=None, matching the torch `dct` helper).
    Cached: built once per process, not per forward call."""
    k = np.arange(n)[:, None].astype(np.float64)   # frequency index
    m = np.arange(n)[None, :].astype(np.float64)   # time index
    D = 2.0 * np.cos(np.pi * (2.0 * m + 1.0) * k / (2.0 * n))
    return np.ascontiguousarray(D.T.astype(np.float32))


def _fec_kernel(x_ref, dctT_ref, gamma_ref, beta_ref, w1_ref, b1_ref, w2_ref,
                o_ref):
    x = x_ref[...].astype(jnp.float32)                        # (TM, L)
    mm_dt = dctT_ref.dtype                                    # matmul operand dtype

    # DCT-II over the last dim, expressed as an MXU matmul.
    freq = jnp.dot(x.astype(mm_dt), dctT_ref[...],
                   preferred_element_type=jnp.float32)        # (TM, L)

    # LayerNorm #1 (its affine is folded into w1 / b1 on the host).
    mu = jnp.mean(freq, axis=-1, keepdims=True)
    ctr = freq - mu
    var = jnp.mean(ctr * ctr, axis=-1, keepdims=True)
    y = ctr * jax.lax.rsqrt(var + EPS)                        # (TM, L)

    # fc: Linear -> Dropout(eval: identity) -> ReLU -> Linear -> Sigmoid.
    # TODO(synk): train-mode Dropout(p=0.1) masking is not implemented.
    h = jnp.maximum(
        jnp.dot(y.astype(mm_dt), w1_ref[...],
                preferred_element_type=jnp.float32) + b1_ref[...], 0.0)
    s = jax.nn.sigmoid(
        jnp.dot(h.astype(mm_dt), w2_ref[...],
                preferred_element_type=jnp.float32))          # (TM, L)

    # LayerNorm #2 (same dct_norm parameters; affine applied here).
    mu2 = jnp.mean(s, axis=-1, keepdims=True)
    ctr2 = s - mu2
    var2 = jnp.mean(ctr2 * ctr2, axis=-1, keepdims=True)
    lr = ctr2 * jax.lax.rsqrt(var2 + EPS) * gamma_ref[...] + beta_ref[...]

    o_ref[...] = (x * lr).astype(o_ref.dtype)                 # x * lr_weight


def dct_channel_block_forward(x, gamma, beta, w1, w2, *,
                              matmul_dtype=jnp.float32):
    """x: (B, C, 96).  gamma/beta: (96,) LayerNorm affine params.
    w1: (96, 192), w2: (192, 96) -- fc weights pre-transposed for
    right-multiplication (i.e. fc[0].weight.T and fc[3].weight.T).
    matmul_dtype: jnp.float32 (exact) or jnp.bfloat16 (higher MXU throughput
    on v6e/v7x at looser numerics)."""
    b, c, l = x.shape
    assert l == L, "nn.LayerNorm([96]) requires seq length == 96"
    rows = b * c
    x2d = x.reshape(rows, l)

    # ---- host-side parameter prep (cheap; constant-folds under jit) --------
    dctT = jnp.asarray(_dct_matrix_T_np(l), dtype=matmul_dtype)
    gamma2d = gamma.astype(jnp.float32).reshape(1, l)
    beta2d = beta.astype(jnp.float32).reshape(1, l)
    # Fold LayerNorm#1 affine into fc1:  (g*n + b) @ W1 == n @ (g[:,None]*W1) + b @ W1
    w1f = gamma2d.reshape(l, 1) * w1.astype(jnp.float32)       # (96, 192)
    b1 = beta2d @ w1.astype(jnp.float32)                       # (1, 192)
    # Zero-pad hidden 192 -> 256 (exact; ReLU(0)=0, padded w2 rows are zero).
    w1p = jnp.zeros((l, HIDDEN_PAD), jnp.float32).at[:, :HIDDEN].set(w1f)
    b1p = jnp.zeros((1, HIDDEN_PAD), jnp.float32).at[:, :HIDDEN].set(b1)
    w2p = jnp.zeros((HIDDEN_PAD, l), jnp.float32).at[:HIDDEN, :].set(
        w2.astype(jnp.float32))
    w1p = w1p.astype(matmul_dtype)
    w2p = w2p.astype(matmul_dtype)

    # ---- row-tiled 1-D grid -------------------------------------------------
    tm = min(_MAX_TM, _round_up(rows, 8))
    grid = (pl.cdiv(rows, tm),)
    row_spec = pl.BlockSpec((tm, l), lambda i: (i, 0))          # pipelined
    resident = lambda shp: pl.BlockSpec(shp, lambda i: (0, 0))  # stays in VMEM

    cost = pl.CostEstimate(
        flops=2 * rows * (l * l + l * HIDDEN_PAD + HIDDEN_PAD * l),
        transcendentals=rows * l,                               # sigmoid
        bytes_accessed=2 * rows * l * 4
        + 4 * (l * l + 2 * l * HIDDEN_PAD + HIDDEN_PAD + 2 * l),
    )

    out2d = pl.pallas_call(
        _fec_kernel,
        out_shape=jax.ShapeDtypeStruct((rows, l), x.dtype),
        grid_spec=pltpu.PrefetchScalarGridSpec(
            num_scalar_prefetch=0,
            grid=grid,
            in_specs=[
                row_spec,                        # x rows (double-buffered)
                resident((l, l)),                # DCT matrix (transposed)
                resident((1, l)),                # LN gamma (for LN #2)
                resident((1, l)),                # LN beta  (for LN #2)
                resident((l, HIDDEN_PAD)),       # fc1 weight (gamma-folded, padded)
                resident((1, HIDDEN_PAD)),       # fc1 folded bias (beta @ w1)
                resident((HIDDEN_PAD, l)),       # fc2 weight (padded)
            ],
            out_specs=row_spec,
        ),
        compiler_params=pltpu.CompilerParams(
            dimension_semantics=("parallel",)),   # lets v7x shard rows over 2 TCs
        cost_estimate=cost,
    )(x2d, dctT, gamma2d, beta2d, w1p, b1p, w2p)

    return out2d.reshape(b, c, l)


def _reference(x, gamma, beta, w1, w2):
    """Pure-JAX f32 reference of the same forward pass."""
    dctT = jnp.asarray(_dct_matrix_T_np(x.shape[-1]), jnp.float32)
    freq = jnp.einsum("bcl,lk->bck", x.astype(jnp.float32), dctT)

    def ln(v):
        mu = jnp.mean(v, axis=-1, keepdims=True)
        var = jnp.mean((v - mu) ** 2, axis=-1, keepdims=True)
        return (v - mu) / jnp.sqrt(var + EPS) * gamma + beta

    y = ln(freq)
    h = jnp.maximum(y @ w1, 0.0)
    s = jax.nn.sigmoid(h @ w2)
    lr = ln(s)
    return x * lr


if __name__ == "__main__":
    key = jax.random.PRNGKey(0)
    kx, kg, kb, k1, k2 = jax.random.split(key, 5)

    B, C = 2, 4
    x = jax.random.normal(kx, (B, C, L), dtype=jnp.float32)

    # Deterministic parameter init (synthetic; no checkpoint load).
    gamma = 1.0 + 0.01 * jax.random.normal(kg, (L,), dtype=jnp.float32)
    beta = 0.01 * jax.random.normal(kb, (L,), dtype=jnp.float32)
    # torch Linear default init ~ U(-1/sqrt(fan_in), 1/sqrt(fan_in)); stored
    # pre-transposed so the kernel right-multiplies.
    w1 = jax.random.uniform(k1, (L, HIDDEN), jnp.float32,
                            -1.0 / np.sqrt(L), 1.0 / np.sqrt(L))
    w2 = jax.random.uniform(k2, (HIDDEN, L), jnp.float32,
                            -1.0 / np.sqrt(HIDDEN), 1.0 / np.sqrt(HIDDEN))

    out = jax.block_until_ready(
        dct_channel_block_forward(x, gamma, beta, w1, w2))
    ref = jax.block_until_ready(_reference(x, gamma, beta, w1, w2))

    assert out.shape == (B, C, L)
    assert np.allclose(np.asarray(out), np.asarray(ref), rtol=1e-4, atol=1e-4)

    print("KERNEL_OK")
</pallas_src>

<mosaic_0001>
module attributes {stable_mosaic.version = 11 : i64} {
  func.func @_fec_kernel(%arg0: i32, %arg1: memref<8x96xf32, #tpu.memory_space<vmem>>, %arg2: memref<96x96xf32, #tpu.memory_space<vmem>>, %arg3: memref<1x96xf32, #tpu.memory_space<vmem>>, %arg4: memref<1x96xf32, #tpu.memory_space<vmem>>, %arg5: memref<96x256xf32, #tpu.memory_space<vmem>>, %arg6: memref<1x256xf32, #tpu.memory_space<vmem>>, %arg7: memref<256x96xf32, #tpu.memory_space<vmem>>, %arg8: memref<8x96xf32, #tpu.memory_space<vmem>>) attributes {dimension_semantics = [#tpu.dimension_semantics<parallel>], iteration_bounds = array<i64: 1>, scalar_prefetch = 0 : i64, scratch_operands = 0 : i64, tpu.core_type = #tpu.core_type<tc>, window_params = [{transform_indices = @transform_0, window_bounds = array<i64: 8, 96>}, {pipeline_mode = #tpu.pipeline_mode<synchronous>, transform_indices = @transform_1, window_bounds = array<i64: 96, 96>}, {pipeline_mode = #tpu.pipeline_mode<synchronous>, transform_indices = @transform_2, window_bounds = array<i64: 1, 96>}, {pipeline_mode = #tpu.pipeline_mode<synchronous>, transform_indices = @transform_3, window_bounds = array<i64: 1, 96>}, {pipeline_mode = #tpu.pipeline_mode<synchronous>, transform_indices = @transform_4, window_bounds = array<i64: 96, 256>}, {pipeline_mode = #tpu.pipeline_mode<synchronous>, transform_indices = @transform_5, window_bounds = array<i64: 1, 256>}, {pipeline_mode = #tpu.pipeline_mode<synchronous>, transform_indices = @transform_6, window_bounds = array<i64: 256, 96>}, {transform_indices = @transform_7, window_bounds = array<i64: 8, 96>}]} {
    %c0 = arith.constant 0 : index
    %c0_0 = arith.constant 0 : index
    %0 = vector.load %arg1[%c0, %c0_0] : memref<8x96xf32, #tpu.memory_space<vmem>>, vector<8x96xf32>
    %c0_1 = arith.constant 0 : index
    %c0_2 = arith.constant 0 : index
    %1 = vector.load %arg2[%c0_1, %c0_2] : memref<96x96xf32, #tpu.memory_space<vmem>>, vector<96x96xf32>
    %cst = arith.constant dense<0.000000e+00> : vector<8x96xf32>
    %2 = tpu.matmul %0, %1, %cst {dimension_numbers = #tpu.dot_dimension_numbers<[1], [0], [0], [1], [0, 0, 1, 1], [], []>} : vector<8x96xf32>, vector<96x96xf32>, vector<8x96xf32> -> vector<8x96xf32>
    %cst_3 = arith.constant dense<0.000000e+00> : vector<8xf32>
    %3 = vector.multi_reduction <add>, %2, %cst_3 [1] : vector<8x96xf32> to vector<8xf32>
    %4 = vector.shape_cast %3 : vector<8xf32> to vector<8x1xf32>
    %cst_4 = arith.constant 9.600000e+01 : f32
    %5 = vector.broadcast %cst_4 : f32 to vector<8x1xf32>
    %6 = arith.divf %4, %5 : vector<8x1xf32>
    %7 = vector.broadcast %6 : vector<8x1xf32> to vector<8x96xf32>
    %8 = arith.subf %2, %7 : vector<8x96xf32>
    %9 = arith.mulf %8, %8 : vector<8x96xf32>
    %cst_5 = arith.constant dense<0.000000e+00> : vector<8xf32>
    %10 = vector.multi_reduction <add>, %9, %cst_5 [1] : vector<8x96xf32> to vector<8xf32>
    %11 = vector.shape_cast %10 : vector<8xf32> to vector<8x1xf32>
    %cst_6 = arith.constant 9.600000e+01 : f32
    %12 = vector.broadcast %cst_6 : f32 to vector<8x1xf32>
    %13 = arith.divf %11, %12 : vector<8x1xf32>
    %cst_7 = arith.constant 9.99999997E-7 : f32
    %14 = vector.broadcast %cst_7 : f32 to vector<8x1xf32>
    %15 = arith.addf %13, %14 : vector<8x1xf32>
    %16 = math.rsqrt %15 : vector<8x1xf32>
    %17 = vector.broadcast %16 : vector<8x1xf32> to vector<8x96xf32>
    %18 = arith.mulf %8, %17 : vector<8x96xf32>
    %c0_8 = arith.constant 0 : index
    %c0_9 = arith.constant 0 : index
    %19 = vector.load %arg5[%c0_8, %c0_9] : memref<96x256xf32, #tpu.memory_space<vmem>>, vector<96x256xf32>
    %cst_10 = arith.constant dense<0.000000e+00> : vector<8x256xf32>
    %20 = tpu.matmul %18, %19, %cst_10 {dimension_numbers = #tpu.dot_dimension_numbers<[1], [0], [0], [1], [0, 0, 1, 1], [], []>} : vector<8x96xf32>, vector<96x256xf32>, vector<8x256xf32> -> vector<8x256xf32>
    %c0_11 = arith.constant 0 : index
    %c0_12 = arith.constant 0 : index
    %21 = vector.load %arg6[%c0_11, %c0_12] : memref<1x256xf32, #tpu.memory_space<vmem>>, vector<1x256xf32>
    %22 = vector.broadcast %21 : vector<1x256xf32> to vector<8x256xf32>
    %23 = arith.addf %20, %22 : vector<8x256xf32>
    %cst_13 = arith.constant 0.000000e+00 : f32
    %24 = vector.broadcast %cst_13 : f32 to vector<8x256xf32>
    %25 = arith.maximumf %23, %24 : vector<8x256xf32>
    %c0_14 = arith.constant 0 : index
    %c0_15 = arith.constant 0 : index
    %26 = vector.load %arg7[%c0_14, %c0_15] : memref<256x96xf32, #tpu.memory_space<vmem>>, vector<256x96xf32>
    %cst_16 = arith.constant dense<0.000000e+00> : vector<8x96xf32>
    %27 = tpu.matmul %25, %26, %cst_16 {dimension_numbers = #tpu.dot_dimension_numbers<[1], [0], [0], [1], [0, 0, 1, 1], [], []>} : vector<8x256xf32>, vector<256x96xf32>, vector<8x96xf32> -> vector<8x96xf32>
    %28 = arith.negf %27 : vector<8x96xf32>
    %29 = math.exp %28 : vector<8x96xf32>
    %cst_17 = arith.constant 1.000000e+00 : f32
    %30 = vector.broadcast %cst_17 : f32 to vector<8x96xf32>
    %31 = arith.addf %30, %29 : vector<8x96xf32>
    %32 = arith.divf %30, %31 : vector<8x96xf32>
    %cst_18 = arith.constant dense<0.000000e+00> : vector<8xf32>
    %33 = vector.multi_reduction <add>, %32, %cst_18 [1] : vector<8x96xf32> to vector<8xf32>
    %34 = vector.shape_cast %33 : vector<8xf32> to vector<8x1xf32>
    %cst_19 = arith.constant 9.600000e+01 : f32
    %35 = vector.broadcast %cst_19 : f32 to vector<8x1xf32>
    %36 = arith.divf %34, %35 : vector<8x1xf32>
    %37 = vector.broadcast %36 : vector<8x1xf32> to vector<8x96xf32>
    %38 = arith.subf %32, %37 : vector<8x96xf32>
    %39 = arith.mulf %38, %38 : vector<8x96xf32>
    %cst_20 = arith.constant dense<0.000000e+00> : vector<8xf32>
    %40 = vector.multi_reduction <add>, %39, %cst_20 [1] : vector<8x96xf32> to vector<8xf32>
    %41 = vector.shape_cast %40 : vector<8xf32> to vector<8x1xf32>
    %cst_21 = arith.constant 9.600000e+01 : f32
    %42 = vector.broadcast %cst_21 : f32 to vector<8x1xf32>
    %43 = arith.divf %41, %42 : vector<8x1xf32>
    %cst_22 = arith.constant 9.99999997E-7 : f32
    %44 = vector.broadcast %cst_22 : f32 to vector<8x1xf32>
    %45 = arith.addf %43, %44 : vector<8x1xf32>
    %46 = math.rsqrt %45 : vector<8x1xf32>
    %47 = vector.broadcast %46 : vector<8x1xf32> to vector<8x96xf32>
    %48 = arith.mulf %38, %47 : vector<8x96xf32>
    %c0_23 = arith.constant 0 : index
    %c0_24 = arith.constant 0 : index
    %49 = vector.load %arg3[%c0_23, %c0_24] : memref<1x96xf32, #tpu.memory_space<vmem>>, vector<1x96xf32>
    %50 = vector.broadcast %49 : vector<1x96xf32> to vector<8x96xf32>
    %51 = arith.mulf %48, %50 : vector<8x96xf32>
    %c0_25 = arith.constant 0 : index
    %c0_26 = arith.constant 0 : index
    %52 = vector.load %arg4[%c0_25, %c0_26] : memref<1x96xf32, #tpu.memory_space<vmem>>, vector<1x96xf32>
    %53 = vector.broadcast %52 : vector<1x96xf32> to vector<8x96xf32>
    %54 = arith.addf %51, %53 : vector<8x96xf32>
    %55 = arith.mulf %0, %54 : vector<8x96xf32>
    %c0_27 = arith.constant 0 : index
    %c0_28 = arith.constant 0 : index
    %56 = vector.load %arg8[%c0_27, %c0_28] : memref<8x96xf32, #tpu.memory_space<vmem>>, vector<8x96xf32>
    tpu.vector_store %arg8[%c0_27, %c0_28], %55 {strides = array<i32>} : memref<8x96xf32, #tpu.memory_space<vmem>>, vector<8x96xf32>,
    return
  }
  func.func @transform_0(%arg0: i32) -> (i32, i32) {
    %c0_i32 = arith.constant 0 : i32
    %c0_i32_0 = arith.constant 0 : i32
    return %arg0, %c0_i32 : i32, i32
  }
  func.func @transform_1(%arg0: i32) -> (i32, i32) {
    %c0_i32 = arith.constant 0 : i32
    %c0_i32_0 = arith.constant 0 : i32
    %c0_i32_1 = arith.constant 0 : i32
    return %c0_i32, %c0_i32_0 : i32, i32
  }
  func.func @transform_2(%arg0: i32) -> (i32, i32) {
    %c0_i32 = arith.constant 0 : i32
    %c0_i32_0 = arith.constant 0 : i32
    %c0_i32_1 = arith.constant 0 : i32
    return %c0_i32, %c0_i32_0 : i32, i32
  }
  func.func @transform_3(%arg0: i32) -> (i32, i32) {
    %c0_i32 = arith.constant 0 : i32
    %c0_i32_0 = arith.constant 0 : i32
    %c0_i32_1 = arith.constant 0 : i32
    return %c0_i32, %c0_i32_0 : i32, i32
  }
  func.func @transform_4(%arg0: i32) -> (i32, i32) {
    %c0_i32 = arith.constant 0 : i32
    %c0_i32_0 = arith.constant 0 : i32
    %c0_i32_1 = arith.constant 0 : i32
    return %c0_i32, %c0_i32_0 : i32, i32
  }
  func.func @transform_5(%arg0: i32) -> (i32, i32) {
    %c0_i32 = arith.constant 0 : i32
    %c0_i32_0 = arith.constant 0 : i32
    %c0_i32_1 = arith.constant 0 : i32
    return %c0_i32, %c0_i32_0 : i32, i32
  }
  func.func @transform_6(%arg0: i32) -> (i32, i32) {
    %c0_i32 = arith.constant 0 : i32
    %c0_i32_0 = arith.constant 0 : i32
    %c0_i32_1 = arith.constant 0 : i32
    return %c0_i32, %c0_i32_0 : i32, i32
  }
  func.func @transform_7(%arg0: i32) -> (i32, i32) {
    %c0_i32 = arith.constant 0 : i32
    %c0_i32_0 = arith.constant 0 : i32
    return %arg0, %c0_i32 : i32, i32
  }
}

</mosaic_0001>

<llo_original>
// kernel: tpu_custom_call.1
$region0: #{tpu_custom_call.1}
  #allocation0 [shape = 'u32[]', space=smem, size = 0x4, offset = 0x4, fixed_abs, tag = 'smem constant byte address 0x4 - core index']
  #allocation1 [shape = 'u32[144,128]{1,0:T(1,128)}', space=vmem, size = 0x12000, scoped, tag = 'internal scratch']
  %s0 = inlined_call_operand.vmem [shape: f32[8,96], index: 0, kind: input, shape index: {}]
  %s1 = inlined_call_operand.vmem [shape: f32[96,96], index: 1, kind: input, shape index: {}]
  %s2 = inlined_call_operand.vmem [shape: f32[1,96], index: 2, kind: input, shape index: {}]
  %s3 = inlined_call_operand.vmem [shape: f32[1,96], index: 3, kind: input, shape index: {}]
  %s4 = inlined_call_operand.vmem [shape: f32[96,256], index: 4, kind: input, shape index: {}]
  %s5 = inlined_call_operand.vmem [shape: f32[1,256], index: 5, kind: input, shape index: {}]
  %s6 = inlined_call_operand.vmem [shape: f32[256,96], index: 6, kind: input, shape index: {}]
  %s7 = inlined_call_operand.hbm [shape: f32[8,96], index: 7, kind: output, shape index: {}]
  %s8 = sld [smem:[#allocation0]]
  $region38: #{tpu_custom_call.1} parent=0
    _
  %s10 = ssub.s32 1, %s8
  %s11 = scalar_select 0, %s10, %s8
  $region1: #{tpu_custom_call.1} parent=0
    #allocation2 [shape = 'u8[4096]{0}', space=vmem, size = 0x1000, scoped, tag = 'output window, operand 0, single buffered']
    #allocation3 [shape = 's32[1]{0}', space=sflag, size = 0x4, scoped, tag = 'scoped memory for tpu_custom_call.1']
    %12 = vsyncpa [#allocation3], 0
    // Predicated region
    $region2: #{tpu_custom_call.1} parent=1 // pred_check
      _
    $region3: #{tpu_custom_call.1} parent=1 // pred_check_branch
      %14 = sbr.rel (0) target = $region5
    $region4: #{tpu_custom_call.1} parent=1 // pred_region
      _
    $region5: #{tpu_custom_call.1} parent=1 // pred_fallthru
      _
    // Predicated region
    $region6: #{tpu_custom_call.1} parent=1 // pred_check
      _
    $region7: #{tpu_custom_call.1} parent=1 // pred_check_branch
      %16 = sbr.rel (0) target = $region9
    $region8: #{tpu_custom_call.1} parent=1 // pred_region
      _
    $region9: #{tpu_custom_call.1} parent=1 // pred_fallthru
      _
    // Predicated region
    $region10: #{tpu_custom_call.1} parent=1 // pred_check
      _
    $region11: #{tpu_custom_call.1} parent=1 // pred_check_branch
      %18 = sbr.rel (0) target = $region13
    $region12: #{tpu_custom_call.1} parent=1 // pred_region
      _
    $region13: #{tpu_custom_call.1} parent=1 // pred_fallthru
      _
    // Predicated region
    $region14: #{tpu_custom_call.1} parent=1 // pred_check
      _
    $region15: #{tpu_custom_call.1} parent=1 // pred_check_branch
      %20 = sbr.rel (0) target = $region17
    $region16: #{tpu_custom_call.1} parent=1 // pred_region
      _
    $region17: #{tpu_custom_call.1} parent=1 // pred_fallthru
      _
    // Predicated region
    $region18: #{tpu_custom_call.1} parent=1 // pred_check
      _
    $region19: #{tpu_custom_call.1} parent=1 // pred_check_branch
      %22 = sbr.rel (0) target = $region21
    $region20: #{tpu_custom_call.1} parent=1 // pred_region
      _
    $region21: #{tpu_custom_call.1} parent=1 // pred_fallthru
      _
    // Predicated region
    $region22: #{tpu_custom_call.1} parent=1 // pred_check
      _
    $region23: #{tpu_custom_call.1} parent=1 // pred_check_branch
      %24 = sbr.rel (0) target = $region25
    $region24: #{tpu_custom_call.1} parent=1 // pred_region
      _
    $region25: #{tpu_custom_call.1} parent=1 // pred_fallthru
      _
    // Predicated region
    $region26: #{tpu_custom_call.1} parent=1 // pred_check
      _
    $region27: #{tpu_custom_call.1} parent=1 // pred_check_branch
      %26 = sbr.rel (0) target = $region29
    $region28: #{tpu_custom_call.1} parent=1 // pred_region
      _
    $region29: #{tpu_custom_call.1} parent=1 // pred_fallthru
      _
    %v27 = vld [vmem:[%s0] sm:$0xff]
    %v28 = vld [vmem:[%s1] sm:$0xff]
    %v29 = vld [vmem:[%s1 + $0x8] sm:$0xff]
    %v30 = vld [vmem:[%s1 + $0x10] sm:$0xff]
    %v31 = vld [vmem:[%s1 + $0x18] sm:$0xff]
    %v32 = vld [vmem:[%s1 + $0x20] sm:$0xff]
    %v33 = vld [vmem:[%s1 + $0x28] sm:$0xff]
    %v34 = vld [vmem:[%s1 + $0x30] sm:$0xff]
    %v35 = vld [vmem:[%s1 + $0x38] sm:$0xff]
    %v36 = vld [vmem:[%s1 + $0x40] sm:$0xff]
    %v37 = vld [vmem:[%s1 + $0x48] sm:$0xff]
    %v38 = vld [vmem:[%s1 + $0x50] sm:$0xff]
    %v39 = vld [vmem:[%s1 + $0x58] sm:$0xff]
    %vm40 = vcmask 785408
    %v42 = vsel %vm40, %v27, 0
    %44 = vmatprep.subr.mxu0 0.0
    %45 = vmatpush1.msra.mxu0 %v28
    %46 = vmatprep.subr.mxu0 0.0
    %47 = vmatpush1.msra.mxu0 %v29
    %48 = vmatprep.subr.mxu0 0.0
    %49 = vmatpush1.msra.mxu0 %v30
    %50 = vmatprep.subr.mxu0 0.0
    %51 = vmatpush1.msra.mxu0 %v31
    %52 = vmatprep.subr.mxu0 0.0
    %53 = vmatpush1.msra.mxu0 %v32
    %54 = vmatprep.subr.mxu0 0.0
    %55 = vmatpush1.msra.mxu0 %v33
    %56 = vmatprep.subr.mxu0 0.0
    %57 = vmatpush1.msra.mxu0 %v34
    %58 = vmatprep.subr.mxu0 0.0
    %59 = vmatpush1.msra.mxu0 %v35
    %60 = vmatprep.subr.mxu0 0.0
    %61 = vmatpush1.msra.mxu0 %v36
    %62 = vmatprep.subr.mxu0 0.0
    %63 = vmatpush1.msra.mxu0 %v37
    %64 = vmatprep.subr.mxu0 0.0
    %65 = vmatpush1.msra.mxu0 %v38
    %66 = vmatprep.subr.mxu0 0.0
    %67 = vmatpush1.msra.mxu0 %v39
    %68 = vmatprep.subr.mxu0 0.0
    %69 = vmatpush1.msra.mxu0 0.0
    %70 = vmatprep.subr.mxu0 0.0
    %71 = vmatpush1.msra.mxu0 0.0
    %72 = vmatprep.subr.mxu0 0.0
    %73 = vmatpush1.msra.mxu0 0.0
    %74 = vmatprep.subr.mxu0 0.0
    %75 = vmatpush1.msra.mxu0 0.0
    %76 = vmatprep.subr.mxu0 0.0
    %77 = vmatpush1.msra.mxu0 0.0
    %78 = vmatprep.subr.mxu0 0.0
    %79 = vmatpush1.msra.mxu0 0.0
    %80 = vmatprep.subr.mxu0 0.0
    %81 = vmatpush1.msra.mxu0 0.0
    %82 = vmatprep.subr.mxu0 0.0
    %83 = vmatpush1.msra.mxu0 0.0
    %84 = vmatprep.subr.mxu0 0.0
    %85 = vmatpush1.msra.mxu0 0.0
    %86 = vmatprep.subr.mxu0 0.0
    %87 = vmatpush1.msra.mxu0 0.0
    %88 = vmatprep.subr.mxu0 0.0
    %89 = vmatpush1.msra.mxu0 0.0
    %90 = vmatprep.subr.mxu0 0.0
    %91 = vmatpush1.msra.mxu0 0.0
    %92 = vmatprep.subr.mxu0 0.0
    %93 = vmatpush1.msra.mxu0 0.0
    %94 = vmatprep.subr.mxu0 0.0
    %95 = vmatpush1.msra.mxu0 0.0
    %96 = vmatprep.subr.mxu0 0.0
    %97 = vmatpush1.msra.mxu0 0.0
    %98 = vmatprep.subr.mxu0 0.0
    %99 = vmatpush1.msra.mxu0 0.0
    %100 = vmatprep.subr.mxu0 0.0
    %101 = vmatpush1.msra.mxu0 0.0
    %102 = vmatprep.subr.mxu0 0.0
    %103 = vmatpush1.msra.mxu0 0.0
    %104 = vmatprep.subr.mxu0 0.0
    %105 = vmatpush1.msra.mxu0 0.0
    %106 = vmatprep.subr.mxu0 0.0
    %107 = vmatpush1.msra.mxu0 0.0
    %108 = vmatprep.mubr.f32.mxu0 0.0
    %109 = vmatmul.mubr.f32.gmra.mrb[0].mxu0 %v42
    %v110 = vpop.f32.mrb[0].mxu0
    %v111 = vadd.f32 0.0, %v110
    %v112 = vpop.f32.mrb[0].mxu0
    %113 = vdwg.mxu0
    %v114 = vsel %vm40, %v111, 0.0
    %115 = vadd.xlane.f32.xlu0 %v114
    %v116 = vpop.xlane.xlu0 %115
    %v117 = vrcp.pop 96.0
    %v118 = vmul.f32 %v116, %v117
    %v119 = vsub.f32 %v111, %v118
    %v120 = vmul.f32 %v119, %v119
    %v121 = vsel %vm40, %v120, 0.0
    %122 = vadd.xlane.f32.xlu0 %v121
    %v123 = vpop.xlane.xlu0 %122
    %v124 = vmul.f32 %v123, %v117
    %v125 = vadd.f32 %v124, 1e-06
    %v126 = vrsqrt.pop %v125
    %v127 = vmul.f32 %v119, %v126
    %v128 = vld [vmem:[%s4] sm:$0xff]
    %v129 = vld [vmem:[%s4 + $0x8] sm:$0xff]
    %v130 = vld [vmem:[%s4 + $0x10] sm:$0xff]
    %v131 = vld [vmem:[%s4 + $0x18] sm:$0xff]
    %v132 = vld [vmem:[%s4 + $0x20] sm:$0xff]
    %v133 = vld [vmem:[%s4 + $0x28] sm:$0xff]
    %v134 = vld [vmem:[%s4 + $0x30] sm:$0xff]
    %v135 = vld [vmem:[%s4 + $0x38] sm:$0xff]
    %v136 = vld [vmem:[%s4 + $0x40] sm:$0xff]
    %v137 = vld [vmem:[%s4 + $0x48] sm:$0xff]
    %v138 = vld [vmem:[%s4 + $0x50] sm:$0xff]
    %v139 = vld [vmem:[%s4 + $0x58] sm:$0xff]
    %v140 = vld [vmem:[%s4 + $0x60] sm:$0xff]
    %v141 = vld [vmem:[%s4 + $0x68] sm:$0xff]
    %v142 = vld [vmem:[%s4 + $0x70] sm:$0xff]
    %v143 = vld [vmem:[%s4 + $0x78] sm:$0xff]
    %v144 = vld [vmem:[%s4 + $0x80] sm:$0xff]
    %v145 = vld [vmem:[%s4 + $0x88] sm:$0xff]
    %v146 = vld [vmem:[%s4 + $0x90] sm:$0xff]
    %v147 = vld [vmem:[%s4 + $0x98] sm:$0xff]
    %v148 = vld [vmem:[%s4 + $0xa0] sm:$0xff]
    %v149 = vld [vmem:[%s4 + $0xa8] sm:$0xff]
    %v150 = vld [vmem:[%s4 + $0xb0] sm:$0xff]
    %v151 = vld [vmem:[%s4 + $0xb8] sm:$0xff]
    %v152 = vld [vmem:[%s5] sm:$0x3]
    %v154 = vlaneseq
    %v155 = vshrl.u32 %v154, 7
    %v156 = vsub.s32 0, %v155
    %v157 = vrot.slane %v152, %v156
    %v158 = vlaneseq
    %v159 = vshrl.u32 %v158, 7
    %v160 = vsub.s32 1, %v159
    %v161 = vrot.slane %v152, %v160
    %v165 = vsel %vm40, %v127, 0
    %167 = vmatprep.subr.mxu0 %v129
    %168 = vmatpush1.msra.mxu0 %v128
    %169 = vmatprep.subr.mxu0 %v131
    %170 = vmatpush1.msra.mxu0 %v130
    %171 = vmatprep.subr.mxu0 %v133
    %172 = vmatpush1.msra.mxu0 %v132
    %173 = vmatprep.subr.mxu0 %v135
    %174 = vmatpush1.msra.mxu0 %v134
    %175 = vmatprep.subr.mxu0 %v137
    %176 = vmatpush1.msra.mxu0 %v136
    %177 = vmatprep.subr.mxu0 %v139
    %178 = vmatpush1.msra.mxu0 %v138
    %179 = vmatprep.subr.mxu0 %v141
    %180 = vmatpush1.msra.mxu0 %v140
    %181 = vmatprep.subr.mxu0 %v143
    %182 = vmatpush1.msra.mxu0 %v142
    %183 = vmatprep.subr.mxu0 %v145
    %184 = vmatpush1.msra.mxu0 %v144
    %185 = vmatprep.subr.mxu0 %v147
    %186 = vmatpush1.msra.mxu0 %v146
    %187 = vmatprep.subr.mxu0 %v149
    %188 = vmatpush1.msra.mxu0 %v148
    %189 = vmatprep.subr.mxu0 %v151
    %190 = vmatpush1.msra.mxu0 %v150
    %191 = vmatprep.subr.mxu0 0.0
    %192 = vmatpush1.msra.mxu0 0.0
    %193 = vmatprep.subr.mxu0 0.0
    %194 = vmatpush1.msra.mxu0 0.0
    %195 = vmatprep.subr.mxu0 0.0
    %196 = vmatpush1.msra.mxu0 0.0
    %197 = vmatprep.subr.mxu0 0.0
    %198 = vmatpush1.msra.mxu0 0.0
    %199 = vmatprep.subr.mxu0 0.0
    %200 = vmatpush1.msra.mxu0 0.0
    %201 = vmatprep.subr.mxu0 0.0
    %202 = vmatpush1.msra.mxu0 0.0
    %203 = vmatprep.subr.mxu0 0.0
    %204 = vmatpush1.msra.mxu0 0.0
    %205 = vmatprep.subr.mxu0 0.0
    %206 = vmatpush1.msra.mxu0 0.0
    %207 = vmatprep.subr.mxu0 0.0
    %208 = vmatpush1.msra.mxu0 0.0
    %209 = vmatprep.subr.mxu0 0.0
    %210 = vmatpush1.msra.mxu0 0.0
    %211 = vmatprep.subr.mxu0 0.0
    %212 = vmatpush1.msra.mxu0 0.0
    %213 = vmatprep.subr.mxu0 0.0
    %214 = vmatpush1.msra.mxu0 0.0
    %215 = vmatprep.subr.mxu0 0.0
    %216 = vmatpush1.msra.mxu0 0.0
    %217 = vmatprep.subr.mxu0 0.0
    %218 = vmatpush1.msra.mxu0 0.0
    %219 = vmatprep.subr.mxu0 0.0
    %220 = vmatpush1.msra.mxu0 0.0
    %221 = vmatprep.subr.mxu0 0.0
    %222 = vmatpush1.msra.mxu0 0.0
    %223 = vmatprep.subr.mxu0 0.0
    %224 = vmatpush1.msra.mxu0 0.0
    %225 = vmatprep.subr.mxu0 0.0
    %226 = vmatpush1.msra.mxu0 0.0
    %227 = vmatprep.subr.mxu0 0.0
    %228 = vmatpush1.msra.mxu0 0.0
    %229 = vmatprep.subr.mxu0 0.0
    %230 = vmatpush1.msra.mxu0 0.0
    %231 = vmatprep.mubr.f32.mxu0 0.0
    %232 = vmatmul.mubr.f32.gmra.mrb[0].mxu0 %v165
    %v233 = vpop.f32.mrb[0].mxu0
    %v234 = vadd.f32 %v157, %v233
    %v235 = vpop.f32.mrb[0].mxu0
    %v236 = vadd.f32 %v161, %v235
    %237 = vdwg.mxu0
    %v238 = vmax.f32 %v234, 0.0
    %v239 = vmax.f32 %v236, 0.0
    %v240 = vld [vmem:[%s6] sm:$0xff]
    %v241 = vld [vmem:[%s6 + $0x8] sm:$0xff]
    %v242 = vld [vmem:[%s6 + $0x10] sm:$0xff]
    %v243 = vld [vmem:[%s6 + $0x18] sm:$0xff]
    %v244 = vld [vmem:[%s6 + $0x20] sm:$0xff]
    %v245 = vld [vmem:[%s6 + $0x28] sm:$0xff]
    %v246 = vld [vmem:[%s6 + $0x30] sm:$0xff]
    %v247 = vld [vmem:[%s6 + $0x38] sm:$0xff]
    %v248 = vld [vmem:[%s6 + $0x40] sm:$0xff]
    %v249 = vld [vmem:[%s6 + $0x48] sm:$0xff]
    %v250 = vld [vmem:[%s6 + $0x50] sm:$0xff]
    %v251 = vld [vmem:[%s6 + $0x58] sm:$0xff]
    %v252 = vld [vmem:[%s6 + $0x60] sm:$0xff]
    %v253 = vld [vmem:[%s6 + $0x68] sm:$0xff]
    %v254 = vld [vmem:[%s6 + $0x70] sm:$0xff]
    %v255 = vld [vmem:[%s6 + $0x78] sm:$0xff]
    %v256 = vld [vmem:[%s6 + $0x80] sm:$0xff]
    %v257 = vld [vmem:[%s6 + $0x88] sm:$0xff]
    %v258 = vld [vmem:[%s6 + $0x90] sm:$0xff]
    %v259 = vld [vmem:[%s6 + $0x98] sm:$0xff]
    %v260 = vld [vmem:[%s6 + $0xa0] sm:$0xff]
    %v261 = vld [vmem:[%s6 + $0xa8] sm:$0xff]
    %v262 = vld [vmem:[%s6 + $0xb0] sm:$0xff]
    %v263 = vld [vmem:[%s6 + $0xb8] sm:$0xff]
    %v264 = vld [vmem:[%s6 + $0xc0] sm:$0xff]
    %v265 = vld [vmem:[%s6 + $0xc8] sm:$0xff]
    %v266 = vld [vmem:[%s6 + $0xd0] sm:$0xff]
    %v267 = vld [vmem:[%s6 + $0xd8] sm:$0xff]
    %v268 = vld [vmem:[%s6 + $0xe0] sm:$0xff]
    %v269 = vld [vmem:[%s6 + $0xe8] sm:$0xff]
    %v270 = vld [vmem:[%s6 + $0xf0] sm:$0xff]
    %v271 = vld [vmem:[%s6 + $0xf8] sm:$0xff]
    %272 = vmatprep.subr.mxu0 0.0
    %273 = vmatpush1.msra.mxu0 %v240
    %274 = vmatprep.subr.mxu0 0.0
    %275 = vmatpush1.msra.mxu0 %v241
    %276 = vmatprep.subr.mxu0 0.0
    %277 = vmatpush1.msra.mxu0 %v242
    %278 = vmatprep.subr.mxu0 0.0
    %279 = vmatpush1.msra.mxu0 %v243
    %280 = vmatprep.subr.mxu0 0.0
    %281 = vmatpush1.msra.mxu0 %v244
    %282 = vmatprep.subr.mxu0 0.0
    %283 = vmatpush1.msra.mxu0 %v245
    %284 = vmatprep.subr.mxu0 0.0
    %285 = vmatpush1.msra.mxu0 %v246
    %286 = vmatprep.subr.mxu0 0.0
    %287 = vmatpush1.msra.mxu0 %v247
    %288 = vmatprep.subr.mxu0 0.0
    %289 = vmatpush1.msra.mxu0 %v248
    %290 = vmatprep.subr.mxu0 0.0
    %291 = vmatpush1.msra.mxu0 %v249
    %292 = vmatprep.subr.mxu0 0.0
    %293 = vmatpush1.msra.mxu0 %v250
    %294 = vmatprep.subr.mxu0 0.0
    %295 = vmatpush1.msra.mxu0 %v251
    %296 = vmatprep.subr.mxu0 0.0
    %297 = vmatpush1.msra.mxu0 %v252
    %298 = vmatprep.subr.mxu0 0.0
    %299 = vmatpush1.msra.mxu0 %v253
    %300 = vmatprep.subr.mxu0 0.0
    %301 = vmatpush1.msra.mxu0 %v254
    %302 = vmatprep.subr.mxu0 0.0
    %303 = vmatpush1.msra.mxu0 %v255
    %304 = vmatprep.subr.mxu0 0.0
    %305 = vmatpush1.msra.mxu0 %v256
    %306 = vmatprep.subr.mxu0 0.0
    %307 = vmatpush1.msra.mxu0 %v257
    %308 = vmatprep.subr.mxu0 0.0
    %309 = vmatpush1.msra.mxu0 %v258
    %310 = vmatprep.subr.mxu0 0.0
    %311 = vmatpush1.msra.mxu0 %v259
    %312 = vmatprep.subr.mxu0 0.0
    %313 = vmatpush1.msra.mxu0 %v260
    %314 = vmatprep.subr.mxu0 0.0
    %315 = vmatpush1.msra.mxu0 %v261
    %316 = vmatprep.subr.mxu0 0.0
    %317 = vmatpush1.msra.mxu0 %v262
    %318 = vmatprep.subr.mxu0 0.0
    %319 = vmatpush1.msra.mxu0 %v263
    %320 = vmatprep.subr.mxu0 0.0
    %321 = vmatpush1.msra.mxu0 %v264
    %322 = vmatprep.subr.mxu0 0.0
    %323 = vmatpush1.msra.mxu0 %v265
    %324 = vmatprep.subr.mxu0 0.0
    %325 = vmatpush1.msra.mxu0 %v266
    %326 = vmatprep.subr.mxu0 0.0
    %327 = vmatpush1.msra.mxu0 %v267
    %328 = vmatprep.subr.mxu0 0.0
    %329 = vmatpush1.msra.mxu0 %v268
    %330 = vmatprep.subr.mxu0 0.0
    %331 = vmatpush1.msra.mxu0 %v269
    %332 = vmatprep.subr.mxu0 0.0
    %333 = vmatpush1.msra.mxu0 %v270
    %334 = vmatprep.subr.mxu0 0.0
    %335 = vmatpush1.msra.mxu0 %v271
    %336 = vmatprep.mubr.f32.mxu0 %v239
    %337 = vmatmul.mubr.f32.gmra.mrb[0].mxu0 %v238
    %v338 = vpop.f32.mrb[0].mxu0
    %v339 = vadd.f32 0.0, %v338
    %v340 = vpop.f32.mrb[0].mxu0
    %341 = vdwg.mxu0
    %v342 = vxor.u32 %v339, 2147483648
    %v343 = vmul.f32 %v342, 1.442695
    %v344 = vpow.pop %v343
    %v345 = vadd.f32 %v344, 1.0
    %v346 = vrcp.pop %v345
    %v347 = vmul.f32 1.0, %v346
    %v348 = vsel %vm40, %v347, 0.0
    %349 = vadd.xlane.f32.xlu0 %v348
    %v350 = vpop.xlane.xlu0 %349
    %v351 = vmul.f32 %v350, %v117
    %v352 = vsub.f32 %v347, %v351
    %v353 = vmul.f32 %v352, %v352
    %v354 = vsel %vm40, %v353, 0.0
    %355 = vadd.xlane.f32.xlu0 %v354
    %v356 = vpop.xlane.xlu0 %355
    %v357 = vmul.f32 %v356, %v117
    %v358 = vadd.f32 %v357, 1e-06
    %v359 = vrsqrt.pop %v358
    %v360 = vmul.f32 %v352, %v359
    %v361 = vld [vmem:[%s2] sm:$0x1]
    %v363 = vlaneseq
    %v364 = vshrl.u32 %v363, 7
    %v365 = vsub.s32 0, %v364
    %v366 = vrot.slane %v361, %v365
    %v368 = vmul.f32 %v360, %v366
    %v369 = vld [vmem:[%s3] sm:$0x1]
    %v371 = vlaneseq
    %v372 = vshrl.u32 %v371, 7
    %v373 = vsub.s32 0, %v372
    %v374 = vrot.slane %v369, %v373
    %v376 = vadd.f32 %v368, %v374
    %v377 = vmul.f32 %v27, %v376
    %378 = vst.msk [vmem:[#allocation2] sm:$0xff] %vm40, %v377
    // Predicated region
    $region30: #{tpu_custom_call.1} parent=1 // pred_check
      _
    $region31: #{tpu_custom_call.1} parent=1 // pred_check_branch
      %380 = sbr.rel (0) target = $region33
    $region32: #{tpu_custom_call.1} parent=1 // pred_region
      %s382 = ssub.s32 128, 128
      %383 = vsyncadd [#allocation3], %s382
      %s385 = sshll.u32 [#allocation2], 4
      %s386 = int_to_ptr.vmem [resolvable:$true] %s385
      %388 = dma.vmem_to_hbm [thread:$0]  %s386, 128, %s7, [#allocation3]
    $region33: #{tpu_custom_call.1} parent=1 // pred_fallthru
      _
    // Predicated region
    $region34: #{tpu_custom_call.1} parent=1 // pred_check
      _
    $region35: #{tpu_custom_call.1} parent=1 // pred_check_branch
      %390 = sbr.rel (0) target = $region37
    $region36: #{tpu_custom_call.1} parent=1 // pred_region
      %391 = dma.done [#allocation3], 128
    $region37: #{tpu_custom_call.1} parent=1 // pred_fallthru
      _
    %392 = vsyncpa [#allocation3], 1

</llo_original>
